<compile_context>
chip_gen: v7x
topology: tpu7x:2x2x1
jax: 0.10.0
libtpu: 0.0.40
codegen_flags: <defaults>
</compile_context>

<pallas_src>
import jax
import jax.numpy as jnp
from jax.experimental import pallas as pl
from jax.experimental.pallas import tpu as pltpu


def _round_up(a: int, b: int) -> int:
    return (a + b - 1) // b * b


def _vmem_capacity_bytes() -> int:
    try:
        return int(pltpu.get_tpu_info().vmem_capacity_bytes)
    except Exception:
        return 64 * 1024 * 1024  # conservative fallback (v7x per-TC VMEM)


# ---------------------------------------------------------------------------
# Kernels.  Grid = (row tiles, column tiles, d_ff chunks); axis 2 = reduction.
# ---------------------------------------------------------------------------
def _ffn_kernel_acc(x_ref, w1_ref, b1_ref, w2_ref, b2_ref, o_ref, acc_ref):
    """Variant with an f32 VMEM accumulator (for non-f32 output dtypes)."""
    k = pl.program_id(2)

    @pl.when(k == 0)
    def _():
        # Fold b2 into the accumulator init (broadcast once per output tile).
        acc_ref[...] = jnp.broadcast_to(b2_ref[...], acc_ref.shape)

    xb = x_ref[...].astype(jnp.bfloat16)           # cast in VMEM (VPU), not HBM
    h = jnp.dot(xb, w1_ref[...], preferred_element_type=jnp.float32)
    h = jnp.maximum(h + b1_ref[...], 0.0)          # bias + ReLU in f32
    # Dropout: identity in eval mode.
    acc_ref[...] += jnp.dot(h.astype(w2_ref.dtype), w2_ref[...],
                            preferred_element_type=jnp.float32)

    @pl.when(k == pl.num_programs(2) - 1)
    def _():
        o_ref[...] = acc_ref[...].astype(o_ref.dtype)


def _ffn_kernel_direct(x_ref, w1_ref, b1_ref, w2_ref, b2_ref, o_ref):
    """f32-output variant: accumulate straight into the resident output block."""
    k = pl.program_id(2)

    @pl.when(k == 0)
    def _():
        o_ref[...] = jnp.broadcast_to(b2_ref[...], o_ref.shape)

    xb = x_ref[...].astype(jnp.bfloat16)
    h = jnp.dot(xb, w1_ref[...], preferred_element_type=jnp.float32)
    h = jnp.maximum(h + b1_ref[...], 0.0)
    # Dropout: identity in eval mode.
    o_ref[...] += jnp.dot(h.astype(w2_ref.dtype), w2_ref[...],
                          preferred_element_type=jnp.float32)


def _vmem_estimate(tm, tk, tn, dmp, x_bytes, out_bytes, use_scratch):
    est = (2 * tm * dmp * x_bytes        # x tile (double-buffered, input dtype)
           + 2 * dmp * tk * 2            # W1 chunk (bf16, double-buffered)
           + 2 * tk * tn * 2             # W2 chunk (bf16, double-buffered)
           + 2 * tk * 4 + 2 * tn * 4     # b1 / b2 chunks (f32)
           + 2 * tm * tn * out_bytes     # output tile (double-buffered)
           + tm * tk * (4 + 2))          # materialized f32 h + its bf16 copy
    if use_scratch:
        est += tm * tn * 4               # f32 accumulator scratch
    return est


# ---------------------------------------------------------------------------
# Factory: one-time weight prep, returns ffn(x) closure.
# ---------------------------------------------------------------------------
def make_feed_forward(w1, b1, w2, b2, *, tm=None, tk_ff=None):
    """w1: (d_model, d_ff), w2: (d_ff, d_model) in math layout
    (i.e. transposed relative to PyTorch nn.Linear storage).
    Returns a callable ffn(x) with x: (batch, seq, d_model)."""
    d_model, d_ff = w1.shape
    assert w2.shape == (d_ff, d_model)
    assert b1.shape == (d_ff,) and b2.shape == (d_model,)

    # ---- Generation-aware sizing -----------------------------------------
    cap = _vmem_capacity_bytes()
    budget = int(0.85 * cap)
    small_vmem = cap <= 80 * 1024 * 1024           # v7x-class (64 MiB / TC)
    tm_target = tm if tm is not None else (512 if small_vmem else 768)
    tk_target = tk_ff if tk_ff is not None else (256 if small_vmem else 512)

    align = 256 if d_model >= 256 else 128         # v6e/v7x MXU is 2x256x256
    dmp = _round_up(d_model, align)                # lane-dense feature dim
    d_ff_pad = _round_up(d_ff, align)

    # d_ff chunk candidates: multiples of `align` that divide d_ff_pad exactly.
    tk_candidates = sorted(
        {m * align for m in range(1, d_ff_pad // align + 1)
         if d_ff_pad % (m * align) == 0 and m * align <= max(tk_target, align)},
        reverse=True)

    # ---- Pad + cast weights ONCE (hoisted out of the per-call path) -------
    w1p = jnp.pad(w1.astype(jnp.bfloat16),
                  ((0, dmp - d_model), (0, d_ff_pad - d_ff)))
    w2p = jnp.pad(w2.astype(jnp.bfloat16),
                  ((0, d_ff_pad - d_ff), (0, dmp - d_model)))
    b1p = jnp.pad(b1.astype(jnp.float32), (0, d_ff_pad - d_ff)).reshape(1, d_ff_pad)
    b2p = jnp.pad(b2.astype(jnp.float32), (0, dmp - d_model)).reshape(1, dmp)

    vmem_limit = max(32 * 1024 * 1024, min(int(0.87 * cap), cap))

    def ffn(x):
        batch, seq, dm = x.shape
        assert dm == d_model
        M = batch * seq
        out_dtype = x.dtype
        x_bytes = jnp.dtype(x.dtype).itemsize
        out_bytes = jnp.dtype(out_dtype).itemsize
        use_scratch = out_dtype != jnp.float32

        # ---- Per-call tile selection (cheap Python; weights untouched) ----
        tm_eff = min(tm_target, _round_up(M, 8))
        tk_idx = 0
        tk_eff = tk_candidates[tk_idx]

        # Column-parallel split for small-M (decode-like) shapes: give the
        # second TensorCore work via a second "parallel" grid axis.
        m_tiles_est = pl.cdiv(_round_up(M, 8), tm_eff)
        if m_tiles_est < 2 and dmp >= 2 * align and dmp % (2 * align) == 0:
            tn_eff = dmp // 2
        else:
            tn_eff = dmp

        # Shrink-to-fit the VMEM budget.
        while _vmem_estimate(tm_eff, tk_eff, tn_eff, dmp,
                             x_bytes, out_bytes, use_scratch) > budget:
            if tk_idx + 1 < len(tk_candidates):
                tk_idx += 1
                tk_eff = tk_candidates[tk_idx]
            elif tm_eff > 64:
                tm_eff = max(64, _round_up(tm_eff // 2, 8))
            else:
                break

        m_pad = _round_up(M, tm_eff)
        m_tiles = m_pad // tm_eff
        n_tiles = dmp // tn_eff
        k_tiles = d_ff_pad // tk_eff
        grid = (m_tiles, n_tiles, k_tiles)

        # ---- Pad x only if needed (no dtype cast in the wrapper). ---------
        x2d = x.reshape(M, d_model)
        if m_pad != M or dmp != d_model:
            x2d = jnp.pad(x2d, ((0, m_pad - M), (0, dmp - d_model)))

        # ---- Advisory cost estimate (weights re-streamed per row tile). ---
        flops = int(2 * m_pad * dmp * d_ff_pad * n_tiles      # GEMM1 (per col tile)
                    + 2 * m_pad * d_ff_pad * dmp)             # GEMM2
        bytes_accessed = int(
            m_tiles * tm_eff * dmp * x_bytes                  # x per row tile
            + m_tiles * n_tiles * dmp * d_ff_pad * 2          # W1 re-streamed
            + m_tiles * d_ff_pad * dmp * 2                    # W2 re-streamed
            + m_tiles * n_tiles * (d_ff_pad + dmp) * 4        # biases
            + m_pad * dmp * out_bytes)                        # output

        in_specs = [
            pl.BlockSpec((tm_eff, dmp), lambda i, j, k: (i, 0)),    # x (k,j-invariant)
            pl.BlockSpec((dmp, tk_eff), lambda i, j, k: (0, k)),    # W1 chunk
            pl.BlockSpec((1, tk_eff), lambda i, j, k: (0, k)),      # b1 chunk
            pl.BlockSpec((tk_eff, tn_eff), lambda i, j, k: (k, j)), # W2 chunk
            pl.BlockSpec((1, tn_eff), lambda i, j, k: (0, j)),      # b2
        ]
        out_spec = pl.BlockSpec((tm_eff, tn_eff), lambda i, j, k: (i, j))

        if use_scratch:
            kernel = _ffn_kernel_acc
            scratch = [pltpu.VMEM((tm_eff, tn_eff), jnp.float32)]
        else:
            kernel = _ffn_kernel_direct
            scratch = []

        out2d = pl.pallas_call(
            kernel,
            out_shape=jax.ShapeDtypeStruct((m_pad, dmp), out_dtype),
            grid_spec=pltpu.PrefetchScalarGridSpec(
                num_scalar_prefetch=0,
                grid=grid,
                in_specs=in_specs,
                out_specs=out_spec,
                scratch_shapes=scratch),
            compiler_params=pltpu.CompilerParams(
                dimension_semantics=("parallel", "parallel", "arbitrary"),
                vmem_limit_bytes=vmem_limit),
            cost_estimate=pl.CostEstimate(
                flops=flops, transcendentals=0, bytes_accessed=bytes_accessed),
        )(x2d, w1p, b1p, w2p, b2p)

        return out2d[:M, :d_model].reshape(batch, seq, d_model)

    return ffn


def feed_forward(x, w1, b1, w2, b2, *, tm=None, tk_ff=None):
    """One-shot convenience wrapper.  For repeated calls with the same weights,
    build the closure once with make_feed_forward() to avoid re-converting
    the weights on every call."""
    return make_feed_forward(w1, b1, w2, b2, tm=tm, tk_ff=tk_ff)(x)


if __name__ == "__main__":
    # Small shapes consistent with the module: d_model=32, d_ff=64.
    batch, seq, d_model, d_ff = 2, 8, 32, 64

    key = jax.random.PRNGKey(0)
    kx, kw1, kb1, kw2, kb2 = jax.random.split(key, 5)

    x = jax.random.normal(kx, (batch, seq, d_model), dtype=jnp.float32)
    bound1 = 1.0 / (d_model ** 0.5)
    bound2 = 1.0 / (d_ff ** 0.5)
    w1 = jax.random.uniform(kw1, (d_model, d_ff), minval=-bound1, maxval=bound1,
                            dtype=jnp.float32)
    b1 = jax.random.uniform(kb1, (d_ff,), minval=-bound1, maxval=bound1,
                            dtype=jnp.float32)
    w2 = jax.random.uniform(kw2, (d_ff, d_model), minval=-bound2, maxval=bound2,
                            dtype=jnp.float32)
    b2 = jax.random.uniform(kb2, (d_model,), minval=-bound2, maxval=bound2,
                            dtype=jnp.float32)

    # Weight prep happens once here; subsequent calls reuse the converted copies.
    ffn = make_feed_forward(w1, b1, w2, b2)
    out = ffn(x)
    out = jax.block_until_ready(out)
    assert out.shape == (batch, seq, d_model)
    assert out.dtype == x.dtype

    # Reference 1: bf16 MXU operands + f32 accumulation (matches kernel math).
    xb = x.reshape(-1, d_model).astype(jnp.bfloat16)
    h_ref = jnp.maximum(
        jnp.dot(xb, w1.astype(jnp.bfloat16),
                preferred_element_type=jnp.float32) + b1, 0.0)
    ref_bf16 = (jnp.dot(h_ref.astype(jnp.bfloat16), w2.astype(jnp.bfloat16),
                        preferred_element_type=jnp.float32) + b2
                ).reshape(batch, seq, d_model)
    assert jnp.allclose(out, ref_bf16, atol=1e-3, rtol=1e-3), \
        float(jnp.max(jnp.abs(out - ref_bf16)))

    # Reference 2: pure f32 math, loose tolerance (bf16 operand rounding).
    ref_f32 = (jnp.maximum(x.reshape(-1, d_model) @ w1 + b1, 0.0) @ w2 + b2
               ).reshape(batch, seq, d_model)
    assert jnp.allclose(out, ref_f32, atol=5e-2, rtol=5e-2), \
        float(jnp.max(jnp.abs(out - ref_f32)))

    print("KERNEL_OK")
</pallas_src>

<mosaic_0001>
module attributes {stable_mosaic.version = 11 : i64} {
  func.func @_ffn_kernel_direct(%arg0: i32, %arg1: i32, %arg2: i32, %arg3: memref<16x128xf32, #tpu.memory_space<vmem>>, %arg4: memref<128x128xbf16, #tpu.memory_space<vmem>>, %arg5: memref<1x128xf32, #tpu.memory_space<vmem>>, %arg6: memref<128x128xbf16, #tpu.memory_space<vmem>>, %arg7: memref<1x128xf32, #tpu.memory_space<vmem>>, %arg8: memref<16x128xf32, #tpu.memory_space<vmem>>) attributes {dimension_semantics = [#tpu.dimension_semantics<parallel>, #tpu.dimension_semantics<parallel>, #tpu.dimension_semantics<arbitrary>], iteration_bounds = array<i64: 1, 1, 1>, scalar_prefetch = 0 : i64, scratch_operands = 0 : i64, tpu.core_type = #tpu.core_type<tc>, window_params = [{transform_indices = @transform_0, window_bounds = array<i64: 16, 128>}, {transform_indices = @transform_1, window_bounds = array<i64: 128, 128>}, {transform_indices = @transform_2, window_bounds = array<i64: 1, 128>}, {transform_indices = @transform_3, window_bounds = array<i64: 128, 128>}, {transform_indices = @transform_4, window_bounds = array<i64: 1, 128>}, {transform_indices = @transform_5, window_bounds = array<i64: 16, 128>}]} {
    %c0_i32 = arith.constant 0 : i32
    %0 = arith.cmpi eq, %arg2, %c0_i32 : i32
    %1 = arith.extui %0 : i1 to i32
    %c0_i32_0 = arith.constant 0 : i32
    %2 = arith.cmpi ne, %1, %c0_i32_0 : i32
    scf.if %2 {
      %c0_14 = arith.constant 0 : index
      %c0_15 = arith.constant 0 : index
      %18 = vector.load %arg7[%c0_14, %c0_15] : memref<1x128xf32, #tpu.memory_space<vmem>>, vector<1x128xf32>
      %19 = vector.shape_cast %18 : vector<1x128xf32> to vector<1x128xf32>
      %20 = vector.broadcast %19 : vector<1x128xf32> to vector<16x128xf32>
      %c0_16 = arith.constant 0 : index
      %c0_17 = arith.constant 0 : index
      %21 = vector.load %arg8[%c0_16, %c0_17] : memref<16x128xf32, #tpu.memory_space<vmem>>, vector<16x128xf32>
      tpu.vector_store %arg8[%c0_16, %c0_17], %20 {strides = array<i32>} : memref<16x128xf32, #tpu.memory_space<vmem>>, vector<16x128xf32>,
    } else {
    }
    %c0 = arith.constant 0 : index
    %c0_1 = arith.constant 0 : index
    %3 = vector.load %arg3[%c0, %c0_1] : memref<16x128xf32, #tpu.memory_space<vmem>>, vector<16x128xf32>
    %4 = arith.truncf %3 : vector<16x128xf32> to vector<16x128xbf16>
    %c0_2 = arith.constant 0 : index
    %c0_3 = arith.constant 0 : index
    %5 = vector.load %arg4[%c0_2, %c0_3] : memref<128x128xbf16, #tpu.memory_space<vmem>>, vector<128x128xbf16>
    %cst = arith.constant dense<0.000000e+00> : vector<16x128xf32>
    %6 = tpu.matmul %4, %5, %cst {dimension_numbers = #tpu.dot_dimension_numbers<[1], [0], [0], [1], [0, 0, 1, 1], [], []>} : vector<16x128xbf16>, vector<128x128xbf16>, vector<16x128xf32> -> vector<16x128xf32>
    %c0_4 = arith.constant 0 : index
    %c0_5 = arith.constant 0 : index
    %7 = vector.load %arg5[%c0_4, %c0_5] : memref<1x128xf32, #tpu.memory_space<vmem>>, vector<1x128xf32>
    %8 = vector.broadcast %7 : vector<1x128xf32> to vector<16x128xf32>
    %9 = arith.addf %6, %8 : vector<16x128xf32>
    %cst_6 = arith.constant 0.000000e+00 : f32
    %10 = vector.broadcast %cst_6 : f32 to vector<16x128xf32>
    %11 = arith.maximumf %9, %10 : vector<16x128xf32>
    %c0_7 = arith.constant 0 : index
    %c0_8 = arith.constant 0 : index
    %12 = vector.load %arg8[%c0_7, %c0_8] : memref<16x128xf32, #tpu.memory_space<vmem>>, vector<16x128xf32>
    %13 = arith.truncf %11 : vector<16x128xf32> to vector<16x128xbf16>
    %c0_9 = arith.constant 0 : index
    %c0_10 = arith.constant 0 : index
    %14 = vector.load %arg6[%c0_9, %c0_10] : memref<128x128xbf16, #tpu.memory_space<vmem>>, vector<128x128xbf16>
    %cst_11 = arith.constant dense<0.000000e+00> : vector<16x128xf32>
    %15 = tpu.matmul %13, %14, %cst_11 {dimension_numbers = #tpu.dot_dimension_numbers<[1], [0], [0], [1], [0, 0, 1, 1], [], []>} : vector<16x128xbf16>, vector<128x128xbf16>, vector<16x128xf32> -> vector<16x128xf32>
    %16 = arith.addf %12, %15 : vector<16x128xf32>
    %c0_12 = arith.constant 0 : index
    %c0_13 = arith.constant 0 : index
    %17 = vector.load %arg8[%c0_12, %c0_13] : memref<16x128xf32, #tpu.memory_space<vmem>>, vector<16x128xf32>
    tpu.vector_store %arg8[%c0_12, %c0_13], %16 {strides = array<i32>} : memref<16x128xf32, #tpu.memory_space<vmem>>, vector<16x128xf32>,
    return
  }
  func.func @transform_0(%arg0: i32, %arg1: i32, %arg2: i32) -> (i32, i32) {
    %c0_i32 = arith.constant 0 : i32
    %c0_i32_0 = arith.constant 0 : i32
    return %arg0, %c0_i32 : i32, i32
  }
  func.func @transform_1(%arg0: i32, %arg1: i32, %arg2: i32) -> (i32, i32) {
    %c0_i32 = arith.constant 0 : i32
    %c0_i32_0 = arith.constant 0 : i32
    return %c0_i32, %arg2 : i32, i32
  }
  func.func @transform_2(%arg0: i32, %arg1: i32, %arg2: i32) -> (i32, i32) {
    %c0_i32 = arith.constant 0 : i32
    %c0_i32_0 = arith.constant 0 : i32
    return %c0_i32, %arg2 : i32, i32
  }
  func.func @transform_3(%arg0: i32, %arg1: i32, %arg2: i32) -> (i32, i32) {
    %c0_i32 = arith.constant 0 : i32
    return %arg2, %arg1 : i32, i32
  }
  func.func @transform_4(%arg0: i32, %arg1: i32, %arg2: i32) -> (i32, i32) {
    %c0_i32 = arith.constant 0 : i32
    %c0_i32_0 = arith.constant 0 : i32
    return %c0_i32, %arg1 : i32, i32
  }
  func.func @transform_5(%arg0: i32, %arg1: i32, %arg2: i32) -> (i32, i32) {
    %c0_i32 = arith.constant 0 : i32
    return %arg0, %arg1 : i32, i32
  }
}

</mosaic_0001>

<llo_original>
// kernel: tpu_custom_call.1
$region0: #{tpu_custom_call.1}
  #allocation0 [shape = 'u32[]', space=smem, size = 0x4, offset = 0x4, fixed_abs, tag = 'smem constant byte address 0x4 - core index']
  #allocation1 [shape = 'u32[144,128]{1,0:T(1,128)}', space=vmem, size = 0x12000, scoped, tag = 'internal scratch']
  %s0 = inlined_call_operand.hbm [shape: f32[16,128], index: 0, kind: input, shape index: {}]
  %s1 = inlined_call_operand.hbm [shape: bf16[128,128], index: 1, kind: input, shape index: {}]
  %s2 = inlined_call_operand.vmem [shape: f32[1,128], index: 2, kind: input, shape index: {}]
  %s3 = inlined_call_operand.hbm [shape: bf16[128,128], index: 3, kind: input, shape index: {}]
  %s4 = inlined_call_operand.vmem [shape: f32[1,128], index: 4, kind: input, shape index: {}]
  %s5 = inlined_call_operand.hbm [shape: f32[16,128], index: 5, kind: output, shape index: {}]
  %s6 = sld [smem:[#allocation0]]
  $region46: #{tpu_custom_call.1} parent=0
    _
  %s8 = ssub.s32 1, %s6
  %s9 = scalar_select 0, %s8, %s6
  $region1: #{tpu_custom_call.1} parent=0
    #allocation2 [shape = 'u8[8192]{0}', space=vmem, size = 0x2000, scoped, tag = 'input window, operand 0, single buffered']
    #allocation3 [shape = 's32[1]{0}', space=sflag, size = 0x4, scoped, tag = 'scoped memory for tpu_custom_call.1']
    #allocation4 [shape = 's32[1]{0}', space=sflag, size = 0x4, scoped, tag = 'scoped memory for tpu_custom_call.1']
    #allocation5 [shape = 'u8[32768]{0}', space=vmem, size = 0x8000, scoped, tag = 'input window, operand 1, single buffered']
    #allocation6 [shape = 's32[1]{0}', space=sflag, size = 0x4, scoped, tag = 'scoped memory for tpu_custom_call.1']
    #allocation7 [shape = 'u8[32768]{0}', space=vmem, size = 0x8000, scoped, tag = 'input window, operand 3, single buffered']
    #allocation8 [shape = 'u8[8192]{0}', space=vmem, size = 0x2000, scoped, tag = 'output window, operand 0, single buffered']
    %10 = vsyncpa [#allocation3], 0
    %11 = vsyncpa [#allocation6], 0
    %12 = vsyncpa [#allocation4], 0
    // Predicated region
    $region2: #{tpu_custom_call.1} parent=1 // pred_check
      _
    $region3: #{tpu_custom_call.1} parent=1 // pred_check_branch
      %14 = sbr.rel (0) target = $region5
    $region4: #{tpu_custom_call.1} parent=1 // pred_region
      %s16 = ssub.s32 256, 256
      %17 = vsyncadd [#allocation3], %s16
      %s18 = sshll.u32 [#allocation2], 4
      %s19 = int_to_ptr.vmem [resolvable:$true] %s18
      %24 = dma.hbm_to_vmem [thread:$0]  %s0, 256, %s19, [#allocation3], 128, 128, 8
    $region5: #{tpu_custom_call.1} parent=1 // pred_fallthru
      _
    // Predicated region
    $region6: #{tpu_custom_call.1} parent=1 // pred_check
      _
    $region7: #{tpu_custom_call.1} parent=1 // pred_check_branch
      %26 = sbr.rel (0) target = $region9
    $region8: #{tpu_custom_call.1} parent=1 // pred_region
      %s28 = ssub.s32 1024, 1024
      %29 = vsyncadd [#allocation6], %s28
      %s30 = sshll.u32 [#allocation5], 4
      %s31 = int_to_ptr.vmem [resolvable:$true] %s30
      %36 = dma.hbm_to_vmem [thread:$0]  %s1, 1024, %s31, [#allocation6], 64, 64, 4
    $region9: #{tpu_custom_call.1} parent=1 // pred_fallthru
      _
    // Predicated region
    $region10: #{tpu_custom_call.1} parent=1 // pred_check
      _
    $region11: #{tpu_custom_call.1} parent=1 // pred_check_branch
      %38 = sbr.rel (0) target = $region13
    $region12: #{tpu_custom_call.1} parent=1 // pred_region
      _
    $region13: #{tpu_custom_call.1} parent=1 // pred_fallthru
      _
    // Predicated region
    $region14: #{tpu_custom_call.1} parent=1 // pred_check
      _
    $region15: #{tpu_custom_call.1} parent=1 // pred_check_branch
      %40 = sbr.rel (0) target = $region17
    $region16: #{tpu_custom_call.1} parent=1 // pred_region
      %s42 = ssub.s32 1024, 1024
      %43 = vsyncadd [#allocation6], %s42
      %s44 = sshll.u32 [#allocation7], 4
      %s45 = int_to_ptr.vmem [resolvable:$true] %s44
      %50 = dma.hbm_to_vmem [thread:$0]  %s3, 1024, %s45, [#allocation6], 64, 64, 4
    $region17: #{tpu_custom_call.1} parent=1 // pred_fallthru
      _
    // Predicated region
    $region18: #{tpu_custom_call.1} parent=1 // pred_check
      _
    $region19: #{tpu_custom_call.1} parent=1 // pred_check_branch
      %52 = sbr.rel (0) target = $region21
    $region20: #{tpu_custom_call.1} parent=1 // pred_region
      _
    $region21: #{tpu_custom_call.1} parent=1 // pred_fallthru
      _
    // Predicated region
    $region22: #{tpu_custom_call.1} parent=1 // pred_check
      _
    $region23: #{tpu_custom_call.1} parent=1 // pred_check_branch
      %54 = sbr.rel (0) target = $region25
    $region24: #{tpu_custom_call.1} parent=1 // pred_region
      %55 = dma.done [#allocation3], 256
    $region25: #{tpu_custom_call.1} parent=1 // pred_fallthru
      _
    // Predicated region
    $region26: #{tpu_custom_call.1} parent=1 // pred_check
      _
    $region27: #{tpu_custom_call.1} parent=1 // pred_check_branch
      %57 = sbr.rel (0) target = $region29
    $region28: #{tpu_custom_call.1} parent=1 // pred_region
      %58 = dma.done [#allocation6], 1024
    $region29: #{tpu_custom_call.1} parent=1 // pred_fallthru
      _
    // Predicated region
    $region30: #{tpu_custom_call.1} parent=1 // pred_check
      _
    $region31: #{tpu_custom_call.1} parent=1 // pred_check_branch
      %60 = sbr.rel (0) target = $region33
    $region32: #{tpu_custom_call.1} parent=1 // pred_region
      %61 = dma.done [#allocation6], 1024
    $region33: #{tpu_custom_call.1} parent=1 // pred_fallthru
      _
    %p63 = scmp.eq.s32.totalorder 0, 0
    // Predicated region
    $region34: #{tpu_custom_call.1} parent=1 // pred_check
      %p64 = pneg %p63
    $region35: #{tpu_custom_call.1} parent=1 // pred_check_branch
      %66 = sbr.rel (%p64) target = $region37
    $region36: #{tpu_custom_call.1} parent=1 // pred_region
      %v67 = vld [vmem:[%s4] sm:$0x1]
      %v69 = vlaneseq
      %v70 = vshrl.u32 %v69, 7
      %v71 = vsub.s32 0, %v70
      %v72 = vrot.slane %v67, %v71
      %74 = vst [vmem:[#allocation8] sm:$0xff] %v72
      %75 = vst [vmem:[#allocation8 + $0x8] sm:$0xff] %v72
    $region37: #{tpu_custom_call.1} parent=1 // pred_fallthru
      _
    %v76 = vld [vmem:[#allocation2] sm:$0xff]
    %v77 = vld [vmem:[#allocation2 + $0x8] sm:$0xff]
    %v78 = vpack.c.bf16 %v77, %v76
    %v79 = vld [vmem:[#allocation5] sm:$0xf]
    %v80 = vld [vmem:[#allocation5 + $0x4] sm:$0xf]
    %v81 = vld [vmem:[#allocation5 + $0x8] sm:$0xf]
    %v82 = vld [vmem:[#allocation5 + $0xc] sm:$0xf]
    %v83 = vld [vmem:[#allocation5 + $0x10] sm:$0xf]
    %v84 = vld [vmem:[#allocation5 + $0x14] sm:$0xf]
    %v85 = vld [vmem:[#allocation5 + $0x18] sm:$0xf]
    %v86 = vld [vmem:[#allocation5 + $0x1c] sm:$0xf]
    %v87 = vld [vmem:[#allocation5 + $0x20] sm:$0xf]
    %v88 = vld [vmem:[#allocation5 + $0x24] sm:$0xf]
    %v89 = vld [vmem:[#allocation5 + $0x28] sm:$0xf]
    %v90 = vld [vmem:[#allocation5 + $0x2c] sm:$0xf]
    %v91 = vld [vmem:[#allocation5 + $0x30] sm:$0xf]
    %v92 = vld [vmem:[#allocation5 + $0x34] sm:$0xf]
    %v93 = vld [vmem:[#allocation5 + $0x38] sm:$0xf]
    %v94 = vld [vmem:[#allocation5 + $0x3c] sm:$0xf]
    %v95 = vld [vmem:[%s2] sm:$0x1]
    %v97 = vlaneseq
    %v98 = vshrl.u32 %v97, 7
    %v99 = vsub.s32 0, %v98
    %v100 = vrot.slane %v95, %v99
    %v118 = vunpack.c.l.b16 %v79
    %v119 = vunpack.c.l.b16 %v80
    %v120 = vunpack.c.l.b16 %v81
    %v121 = vunpack.c.l.b16 %v82
    %v122 = vunpack.c.l.b16 %v83
    %v123 = vunpack.c.l.b16 %v84
    %v124 = vunpack.c.l.b16 %v85
    %v125 = vunpack.c.l.b16 %v86
    %v126 = vunpack.c.l.b16 %v87
    %v127 = vunpack.c.l.b16 %v88
    %v128 = vunpack.c.l.b16 %v89
    %v129 = vunpack.c.l.b16 %v90
    %v130 = vunpack.c.l.b16 %v91
    %v131 = vunpack.c.l.b16 %v92
    %v132 = vunpack.c.l.b16 %v93
    %v133 = vunpack.c.l.b16 %v94
    %v134 = vpack.c.b16 %v119, %v118
    %v135 = vpack.c.b16 %v121, %v120
    %v136 = vpack.c.b16 %v123, %v122
    %v137 = vpack.c.b16 %v125, %v124
    %v138 = vpack.c.b16 %v127, %v126
    %v139 = vpack.c.b16 %v129, %v128
    %v140 = vpack.c.b16 %v131, %v130
    %v141 = vpack.c.b16 %v133, %v132
    %150 = vmatprep.subr.bf16.mxu0 0
    %151 = vmatpush1.bf16.msra.mxu0 %v134
    %152 = vmatprep.subr.bf16.mxu0 0
    %153 = vmatpush1.bf16.msra.mxu0 %v135
    %154 = vmatprep.subr.bf16.mxu0 0
    %155 = vmatpush1.bf16.msra.mxu0 %v136
    %156 = vmatprep.subr.bf16.mxu0 0
    %157 = vmatpush1.bf16.msra.mxu0 %v137
    %158 = vmatprep.subr.bf16.mxu0 0
    %159 = vmatpush1.bf16.msra.mxu0 %v138
    %160 = vmatprep.subr.bf16.mxu0 0
    %161 = vmatpush1.bf16.msra.mxu0 %v139
    %162 = vmatprep.subr.bf16.mxu0 0
    %163 = vmatpush1.bf16.msra.mxu0 %v140
    %164 = vmatprep.subr.bf16.mxu0 0
    %165 = vmatpush1.bf16.msra.mxu0 %v141
    %166 = vmatprep.subr.bf16.mxu0 0
    %167 = vmatpush1.bf16.msra.mxu0 0
    %168 = vmatprep.subr.bf16.mxu0 0
    %169 = vmatpush1.bf16.msra.mxu0 0
    %170 = vmatprep.subr.bf16.mxu0 0
    %171 = vmatpush1.bf16.msra.mxu0 0
    %172 = vmatprep.subr.bf16.mxu0 0
    %173 = vmatpush1.bf16.msra.mxu0 0
    %174 = vmatprep.subr.bf16.mxu0 0
    %175 = vmatpush1.bf16.msra.mxu0 0
    %176 = vmatprep.subr.bf16.mxu0 0
    %177 = vmatpush1.bf16.msra.mxu0 0
    %178 = vmatprep.subr.bf16.mxu0 0
    %179 = vmatpush1.bf16.msra.mxu0 0
    %180 = vmatprep.subr.bf16.mxu0 0
    %181 = vmatpush1.bf16.msra.mxu0 0
    %182 = vmatprep.mubr.bf16.mxu0 0
    %183 = vmatmul.mubr.bf16.gmra.mrb[0].mxu0 %v78
    %v184 = vpop.f32.mrb[0].mxu0
    %v185 = vadd.f32 %v100, %v184
    %v186 = vpop.f32.mrb[0].mxu0
    %v187 = vpop.f32.mrb[0].mxu0
    %v188 = vadd.f32 %v100, %v187
    %v189 = vpop.f32.mrb[0].mxu0
    %190 = vdwg.mxu0
    %v191 = vmax.f32 %v185, 0.0
    %v192 = vmax.f32 %v188, 0.0
    %v193 = vld [vmem:[#allocation8] sm:$0xff]
    %v194 = vld [vmem:[#allocation8 + $0x8] sm:$0xff]
    %v195 = vpack.c.bf16 %v192, %v191
    %v196 = vld [vmem:[#allocation7] sm:$0xf]
    %v197 = vld [vmem:[#allocation7 + $0x4] sm:$0xf]
    %v198 = vld [vmem:[#allocation7 + $0x8] sm:$0xf]
    %v199 = vld [vmem:[#allocation7 + $0xc] sm:$0xf]
    %v200 = vld [vmem:[#allocation7 + $0x10] sm:$0xf]
    %v201 = vld [vmem:[#allocation7 + $0x14] sm:$0xf]
    %v202 = vld [vmem:[#allocation7 + $0x18] sm:$0xf]
    %v203 = vld [vmem:[#allocation7 + $0x1c] sm:$0xf]
    %v204 = vld [vmem:[#allocation7 + $0x20] sm:$0xf]
    %v205 = vld [vmem:[#allocation7 + $0x24] sm:$0xf]
    %v206 = vld [vmem:[#allocation7 + $0x28] sm:$0xf]
    %v207 = vld [vmem:[#allocation7 + $0x2c] sm:$0xf]
    %v208 = vld [vmem:[#allocation7 + $0x30] sm:$0xf]
    %v209 = vld [vmem:[#allocation7 + $0x34] sm:$0xf]
    %v210 = vld [vmem:[#allocation7 + $0x38] sm:$0xf]
    %v211 = vld [vmem:[#allocation7 + $0x3c] sm:$0xf]
    %v228 = vunpack.c.l.b16 %v196
    %v229 = vunpack.c.l.b16 %v197
    %v230 = vunpack.c.l.b16 %v198
    %v231 = vunpack.c.l.b16 %v199
    %v232 = vunpack.c.l.b16 %v200
    %v233 = vunpack.c.l.b16 %v201
    %v234 = vunpack.c.l.b16 %v202
    %v235 = vunpack.c.l.b16 %v203
    %v236 = vunpack.c.l.b16 %v204
    %v237 = vunpack.c.l.b16 %v205
    %v238 = vunpack.c.l.b16 %v206
    %v239 = vunpack.c.l.b16 %v207
    %v240 = vunpack.c.l.b16 %v208
    %v241 = vunpack.c.l.b16 %v209
    %v242 = vunpack.c.l.b16 %v210
    %v243 = vunpack.c.l.b16 %v211
    %v244 = vpack.c.b16 %v229, %v228
    %v245 = vpack.c.b16 %v231, %v230
    %v246 = vpack.c.b16 %v233, %v232
    %v247 = vpack.c.b16 %v235, %v234
    %v248 = vpack.c.b16 %v237, %v236
    %v249 = vpack.c.b16 %v239, %v238
    %v250 = vpack.c.b16 %v241, %v240
    %v251 = vpack.c.b16 %v243, %v242
    %260 = vmatprep.subr.bf16.mxu0 0
    %261 = vmatpush1.bf16.msra.mxu0 %v244
    %262 = vmatprep.subr.bf16.mxu0 0
    %263 = vmatpush1.bf16.msra.mxu0 %v245
    %264 = vmatprep.subr.bf16.mxu0 0
    %265 = vmatpush1.bf16.msra.mxu0 %v246
    %266 = vmatprep.subr.bf16.mxu0 0
    %267 = vmatpush1.bf16.msra.mxu0 %v247
    %268 = vmatprep.subr.bf16.mxu0 0
    %269 = vmatpush1.bf16.msra.mxu0 %v248
    %270 = vmatprep.subr.bf16.mxu0 0
    %271 = vmatpush1.bf16.msra.mxu0 %v249
    %272 = vmatprep.subr.bf16.mxu0 0
    %273 = vmatpush1.bf16.msra.mxu0 %v250
    %274 = vmatprep.subr.bf16.mxu0 0
    %275 = vmatpush1.bf16.msra.mxu0 %v251
    %276 = vmatprep.subr.bf16.mxu0 0
    %277 = vmatpush1.bf16.msra.mxu0 0
    %278 = vmatprep.subr.bf16.mxu0 0
    %279 = vmatpush1.bf16.msra.mxu0 0
    %280 = vmatprep.subr.bf16.mxu0 0
    %281 = vmatpush1.bf16.msra.mxu0 0
    %282 = vmatprep.subr.bf16.mxu0 0
    %283 = vmatpush1.bf16.msra.mxu0 0
    %284 = vmatprep.subr.bf16.mxu0 0
    %285 = vmatpush1.bf16.msra.mxu0 0
    %286 = vmatprep.subr.bf16.mxu0 0
    %287 = vmatpush1.bf16.msra.mxu0 0
    %288 = vmatprep.subr.bf16.mxu0 0
    %289 = vmatpush1.bf16.msra.mxu0 0
    %290 = vmatprep.subr.bf16.mxu0 0
    %291 = vmatpush1.bf16.msra.mxu0 0
    %292 = vmatprep.mubr.bf16.mxu0 0
    %293 = vmatmul.mubr.bf16.gmra.mrb[0].mxu0 %v195
    %v294 = vpop.f32.mrb[0].mxu0
    %v295 = vadd.f32 0.0, %v294
    %v296 = vpop.f32.mrb[0].mxu0
    %v297 = vpop.f32.mrb[0].mxu0
    %v298 = vadd.f32 0.0, %v297
    %v299 = vpop.f32.mrb[0].mxu0
    %300 = vdwg.mxu0
    %v301 = vadd.f32 %v193, %v295
    %v302 = vadd.f32 %v194, %v298
    %303 = vst [vmem:[#allocation8] sm:$0xff] %v301
    %304 = vst [vmem:[#allocation8 + $0x8] sm:$0xff] %v302
    // Predicated region
    $region38: #{tpu_custom_call.1} parent=1 // pred_check
      _
    $region39: #{tpu_custom_call.1} parent=1 // pred_check_branch
      %306 = sbr.rel (0) target = $region41
    $region40: #{tpu_custom_call.1} parent=1 // pred_region
      %s308 = ssub.s32 256, 256
      %309 = vsyncadd [#allocation4], %s308
      %s310 = sshll.u32 [#allocation8], 4
      %s311 = int_to_ptr.vmem [resolvable:$true] %s310
      %316 = dma.vmem_to_hbm [thread:$0]  %s311, 256, %s5, [#allocation4], 128, 128, 8
    $region41: #{tpu_custom_call.1} parent=1 // pred_fallthru
      _
    // Predicated region
    $region42: #{tpu_custom_call.1} parent=1 // pred_check
      _
    $region43: #{tpu_custom_call.1} parent=1 // pred_check_branch
      %318 = sbr.rel (0) target = $region45
    $region44: #{tpu_custom_call.1} parent=1 // pred_region
      %319 = dma.done [#allocation4], 256
    $region45: #{tpu_custom_call.1} parent=1 // pred_fallthru
      _
    %320 = vsyncpa [#allocation3], 1
    %321 = vsyncpa [#allocation6], 1
    %322 = vsyncpa [#allocation4], 1

</llo_original>
